<compile_context>
chip_gen: v7x
topology: tpu7x:2x2x1
jax: 0.10.0
libtpu: 0.0.40
codegen_flags: <defaults>
</compile_context>

<pallas_src>
import jax
import jax.numpy as jnp
from jax.experimental import pallas as pl
from jax.experimental.pallas import tpu as pltpu

EPS = 1e-5


def _frozen_bn_kernel(x_ref, p_ref, o_ref):
    # x_ref/o_ref: (ROW_BLK, COL_BLK); p_ref: (ROW_BLK, 2) = [scale | bias].
    scale = p_ref[:, 0:1]
    bias = p_ref[:, 1:2]
    o_ref[...] = (x_ref[...].astype(jnp.float32) * scale + bias).astype(o_ref.dtype)


def _round_down(x, m):
    return (x // m) * m


def _round_up(x, m):
    return ((x + m - 1) // m) * m


def _vmem_budget():
    """(per-buffer tile budget bytes, vmem_limit_bytes) by TPU generation."""
    try:
        vmem = pltpu.get_tpu_info().vmem_capacity_bytes
    except Exception:
        vmem = 64 * 1024 * 1024  # conservative fallback: assume v7x-sized VMEM
    if vmem >= 96 * 1024 * 1024:                    # v5e / v6e: 128 MiB physical
        return 4 * 1024 * 1024, 48 * 1024 * 1024
    return 2 * 1024 * 1024, 32 * 1024 * 1024        # v7x: 64 MiB per TensorCore


def _select_tiles(rows, cols, itemsize, budget_bytes):
    budget_elems = max(budget_bytes // itemsize, 8 * 128)

    # Columns: prefer full rows (one contiguous HBM run per DMA row, unmasked
    # lane-dense stores).  Only split when even an 8-row full-width tile would
    # blow the budget; then use a large multiple-of-128 lane block.
    if 8 * cols <= budget_elems:
        col_blk = cols
    else:
        col_blk = min(8192, max(128, _round_down(budget_elems // 8, 128)))

    # Rows: fill the remaining budget, multiple of 8 (or full extent if < 8).
    if rows < 8:
        row_blk = rows
    else:
        row_blk = max(8, _round_down(budget_elems // col_blk, 8))
        row_blk = min(row_blk, _round_down(rows, 8))
        # v7x megacore: make sure the row axis has >= 2 blocks when possible.
        if pl.cdiv(rows, row_blk) < 2 and row_blk >= 16:
            row_blk = _round_up(pl.cdiv(rows, 2), 8)
    return row_blk, col_blk


def frozen_batch_norm_2d(x, weight, bias, running_mean, running_var):
    """x: (N, C, H, W); params: (C,). Returns (N, C, H, W), same dtype as x."""
    N, C, H, W = x.shape
    rows, cols = N * C, H * W

    # Fold frozen statistics into per-channel (scale, bias) once in the wrapper
    # (cheap (C,) ops); the kernel is then one FMA per element, no rsqrt.
    w = weight.astype(jnp.float32)
    b = bias.astype(jnp.float32)
    rm = running_mean.astype(jnp.float32)
    rv = running_var.astype(jnp.float32)
    scale_c = w * jax.lax.rsqrt(rv + EPS)              # (C,)
    bias_c = b - rm * scale_c                          # (C,)
    params_c = jnp.stack([scale_c, bias_c], axis=-1)   # (C, 2): one DMA / step

    x2d = x.reshape(rows, cols)

    itemsize = jnp.dtype(x.dtype).itemsize
    budget_bytes, vmem_limit = _vmem_budget()
    row_blk, col_blk = _select_tiles(rows, cols, itemsize, budget_bytes)
    grid = (pl.cdiv(rows, row_blk), pl.cdiv(cols, col_blk))

    # Row r of x2d is (n, c) with c = r % C.  When the row block evenly divides
    # C, row blocks never straddle the batch boundary, so the (C, 2) table can
    # be indexed directly (no N-fold replication in HBM); otherwise replicate.
    if C % row_blk == 0:
        params = params_c                                      # (C, 2)
        n_rep = C // row_blk
        p_spec = pl.BlockSpec((row_blk, 2), lambda i, j: (i % n_rep, 0))
    else:
        params = jnp.tile(params_c, (N, 1))                    # (N*C, 2)
        p_spec = pl.BlockSpec((row_blk, 2), lambda i, j: (i, 0))

    x_spec = pl.BlockSpec((row_blk, col_blk), lambda i, j: (i, j))

    out = pl.pallas_call(
        _frozen_bn_kernel,
        out_shape=jax.ShapeDtypeStruct((rows, cols), x.dtype),
        grid_spec=pltpu.PrefetchScalarGridSpec(
            num_scalar_prefetch=0,
            grid=grid,
            in_specs=[x_spec, p_spec],
            out_specs=x_spec,
        ),
        compiler_params=pltpu.CompilerParams(
            dimension_semantics=("parallel", "parallel"),
            vmem_limit_bytes=vmem_limit,
        ),
    )(x2d, params)

    return out.reshape(N, C, H, W)


def frozen_batch_norm_2d_ref(x, weight, bias, running_mean, running_var):
    w = weight.reshape(1, -1, 1, 1)
    b = bias.reshape(1, -1, 1, 1)
    rv = running_var.reshape(1, -1, 1, 1)
    rm = running_mean.reshape(1, -1, 1, 1)
    scale = w * jax.lax.rsqrt(rv + EPS)
    return x * scale + (b - rm * scale)


def _make_inputs(key, N, C, H, W):
    kx, kw, kb, km, kv = jax.random.split(key, 5)
    x = jax.random.normal(kx, (N, C, H, W), dtype=jnp.float32)
    # "Frozen" buffers: __init__ gives ones/zeros; perturb deterministically
    # so the affine transform is non-trivial.
    weight = jnp.ones((C,), jnp.float32) + 0.1 * jax.random.normal(kw, (C,))
    bias = jnp.zeros((C,), jnp.float32) + 0.1 * jax.random.normal(kb, (C,))
    running_mean = 0.1 * jax.random.normal(km, (C,))
    running_var = jnp.ones((C,), jnp.float32) + 0.1 * jax.random.uniform(kv, (C,))
    return x, weight, bias, running_mean, running_var


if __name__ == "__main__":
    key = jax.random.PRNGKey(0)
    keys = jax.random.split(key, 5)

    shapes = [
        (2, 4, 16, 16),      # small, spec-consistent shape
        (4, 512, 32, 32),    # real row tiling, multi-step grid
        (2, 3, 7, 7),        # tiny ragged dims (rows < 8, cols < 128)
        (3, 5, 9, 14),       # ragged last row block (rows=15, cols=126)
        (1, 8, 131073, 1),   # forces column split + ragged last column block
    ]
    for k, shp in zip(keys, shapes):
        x, w, b, rm, rv = _make_inputs(k, *shp)
        out = jax.block_until_ready(frozen_batch_norm_2d(x, w, b, rm, rv))
        ref = frozen_batch_norm_2d_ref(x, w, b, rm, rv)
        assert out.shape == x.shape
        assert jnp.allclose(out, ref, atol=1e-5, rtol=1e-5), f"mismatch at {shp}"

    print("KERNEL_OK")
</pallas_src>

<mosaic_0001>
module attributes {stable_mosaic.version = 11 : i64} {
  func.func @_frozen_bn_kernel(%arg0: i32, %arg1: i32, %arg2: memref<8x256xf32, #tpu.memory_space<vmem>>, %arg3: memref<8x2xf32, #tpu.memory_space<vmem>>, %arg4: memref<8x256xf32, #tpu.memory_space<vmem>>) attributes {dimension_semantics = [#tpu.dimension_semantics<parallel>, #tpu.dimension_semantics<parallel>], iteration_bounds = array<i64: 1, 1>, scalar_prefetch = 0 : i64, scratch_operands = 0 : i64, tpu.core_type = #tpu.core_type<tc>, window_params = [{transform_indices = @transform_0, window_bounds = array<i64: 8, 256>}, {transform_indices = @transform_1, window_bounds = array<i64: 8, 2>}, {transform_indices = @transform_2, window_bounds = array<i64: 8, 256>}]} {
    %c0 = arith.constant 0 : index
    %c0_0 = arith.constant 0 : index
    %0 = vector.load %arg3[%c0, %c0_0] : memref<8x2xf32, #tpu.memory_space<vmem>>, vector<8x1xf32>
    %c0_1 = arith.constant 0 : index
    %c1 = arith.constant 1 : index
    %1 = vector.load %arg3[%c0_1, %c1] : memref<8x2xf32, #tpu.memory_space<vmem>>, vector<8x1xf32>
    %c0_2 = arith.constant 0 : index
    %c0_3 = arith.constant 0 : index
    %2 = vector.load %arg2[%c0_2, %c0_3] : memref<8x256xf32, #tpu.memory_space<vmem>>, vector<8x256xf32>
    %3 = vector.broadcast %0 : vector<8x1xf32> to vector<8x256xf32>
    %4 = arith.mulf %2, %3 : vector<8x256xf32>
    %5 = vector.broadcast %1 : vector<8x1xf32> to vector<8x256xf32>
    %6 = arith.addf %4, %5 : vector<8x256xf32>
    %c0_4 = arith.constant 0 : index
    %c0_5 = arith.constant 0 : index
    %7 = vector.load %arg4[%c0_4, %c0_5] : memref<8x256xf32, #tpu.memory_space<vmem>>, vector<8x256xf32>
    tpu.vector_store %arg4[%c0_4, %c0_5], %6 {strides = array<i32>} : memref<8x256xf32, #tpu.memory_space<vmem>>, vector<8x256xf32>,
    return
  }
  func.func @transform_0(%arg0: i32, %arg1: i32) -> (i32, i32) {
    %c0_i32 = arith.constant 0 : i32
    return %arg0, %arg1 : i32, i32
  }
  func.func @transform_1(%arg0: i32, %arg1: i32) -> (i32, i32) {
    %c0_i32 = arith.constant 0 : i32
    %c0_i32_0 = arith.constant 0 : i32
    return %arg0, %c0_i32 : i32, i32
  }
  func.func @transform_2(%arg0: i32, %arg1: i32) -> (i32, i32) {
    %c0_i32 = arith.constant 0 : i32
    return %arg0, %arg1 : i32, i32
  }
}

</mosaic_0001>

<llo_original>
// kernel: tpu_custom_call.1
$region0: #{tpu_custom_call.1}
  #allocation0 [shape = 'u32[]', space=smem, size = 0x4, offset = 0x4, fixed_abs, tag = 'smem constant byte address 0x4 - core index']
  #allocation1 [shape = 'u32[144,128]{1,0:T(1,128)}', space=vmem, size = 0x12000, scoped, tag = 'internal scratch']
  %s0 = inlined_call_operand.hbm [shape: f32[8,256], index: 0, kind: input, shape index: {}]
  %s1 = inlined_call_operand.vmem [shape: f32[8,2], index: 1, kind: input, shape index: {}]
  %s2 = inlined_call_operand.hbm [shape: f32[8,256], index: 2, kind: output, shape index: {}]
  %s3 = sld [smem:[#allocation0]]
  $region22: #{tpu_custom_call.1} parent=0
    _
  %s5 = ssub.s32 1, %s3
  %s6 = scalar_select 0, %s5, %s3
  $region1: #{tpu_custom_call.1} parent=0
    #allocation2 [shape = 'u8[8192]{0}', space=vmem, size = 0x2000, scoped, tag = 'input window, operand 0, single buffered']
    #allocation3 [shape = 's32[1]{0}', space=sflag, size = 0x4, scoped, tag = 'scoped memory for tpu_custom_call.1']
    #allocation4 [shape = 's32[1]{0}', space=sflag, size = 0x4, scoped, tag = 'scoped memory for tpu_custom_call.1']
    #allocation5 [shape = 'u8[8192]{0}', space=vmem, size = 0x2000, scoped, tag = 'output window, operand 0, single buffered']
    %7 = vsyncpa [#allocation3], 0
    %8 = vsyncpa [#allocation4], 0
    // Predicated region
    $region2: #{tpu_custom_call.1} parent=1 // pred_check
      _
    $region3: #{tpu_custom_call.1} parent=1 // pred_check_branch
      %10 = sbr.rel (0) target = $region5
    $region4: #{tpu_custom_call.1} parent=1 // pred_region
      %s12 = ssub.s32 256, 256
      %13 = vsyncadd [#allocation3], %s12
      %s15 = sshll.u32 [#allocation2], 4
      %s16 = int_to_ptr.vmem [resolvable:$true] %s15
      %18 = dma.hbm_to_vmem [thread:$0]  %s0, 256, %s16, [#allocation3]
    $region5: #{tpu_custom_call.1} parent=1 // pred_fallthru
      _
    // Predicated region
    $region6: #{tpu_custom_call.1} parent=1 // pred_check
      _
    $region7: #{tpu_custom_call.1} parent=1 // pred_check_branch
      %20 = sbr.rel (0) target = $region9
    $region8: #{tpu_custom_call.1} parent=1 // pred_region
      _
    $region9: #{tpu_custom_call.1} parent=1 // pred_fallthru
      _
    // Predicated region
    $region10: #{tpu_custom_call.1} parent=1 // pred_check
      _
    $region11: #{tpu_custom_call.1} parent=1 // pred_check_branch
      %22 = sbr.rel (0) target = $region13
    $region12: #{tpu_custom_call.1} parent=1 // pred_region
      %23 = dma.done [#allocation3], 256
    $region13: #{tpu_custom_call.1} parent=1 // pred_fallthru
      _
    %v24 = vld [vmem:[%s1] sm:$0xff]
    %v25 = vld [vmem:[#allocation2] sm:$0xff]
    %v26 = vld [vmem:[#allocation2 + $0x8] sm:$0xff]
    %28 = vset.pattern.permute.xlu0 0
    %29 = vperm.xlu0 %28, %v24
    %v30 = vpop.permute.xlu0 %29
    %v32 = vmul.f32 %v25, %v30
    %v33 = vmul.f32 %v26, %v30
    %34 = vset.pattern.permute.xlu0 1
    %35 = vperm.xlu0 %34, %v24
    %v36 = vpop.permute.xlu0 %35
    %v38 = vadd.f32 %v32, %v36
    %v39 = vadd.f32 %v33, %v36
    %40 = vst [vmem:[#allocation5] sm:$0xff] %v38
    %41 = vst [vmem:[#allocation5 + $0x8] sm:$0xff] %v39
    // Predicated region
    $region14: #{tpu_custom_call.1} parent=1 // pred_check
      _
    $region15: #{tpu_custom_call.1} parent=1 // pred_check_branch
      %43 = sbr.rel (0) target = $region17
    $region16: #{tpu_custom_call.1} parent=1 // pred_region
      %s45 = ssub.s32 256, 256
      %46 = vsyncadd [#allocation4], %s45
      %s48 = sshll.u32 [#allocation5], 4
      %s49 = int_to_ptr.vmem [resolvable:$true] %s48
      %51 = dma.vmem_to_hbm [thread:$0]  %s49, 256, %s2, [#allocation4]
    $region17: #{tpu_custom_call.1} parent=1 // pred_fallthru
      _
    // Predicated region
    $region18: #{tpu_custom_call.1} parent=1 // pred_check
      _
    $region19: #{tpu_custom_call.1} parent=1 // pred_check_branch
      %53 = sbr.rel (0) target = $region21
    $region20: #{tpu_custom_call.1} parent=1 // pred_region
      %54 = dma.done [#allocation4], 256
    $region21: #{tpu_custom_call.1} parent=1 // pred_fallthru
      _
    %55 = vsyncpa [#allocation3], 1
    %56 = vsyncpa [#allocation4], 1

</llo_original>
